<compile_context>
chip_gen: v6e
topology: v6e:2x2x1
jax: 0.10.0
libtpu: 0.0.40
codegen_flags: <defaults>
</compile_context>

<pallas_src>
import numpy as np
import jax
import jax.numpy as jnp
from jax.experimental import pallas as pl
from jax.experimental.pallas import tpu as pltpu


# ----------------------- kernel 1: fused projections -------------------------
def _fused_proj_kernel(x_ref, w_ref, b_ref, o_ref):
    # (tm, D) @ (D, Npad) + (1, Npad) in one MXU pass; weights/bias stay
    # VMEM-resident across the whole row grid (constant index_map -> no re-DMA).
    o_ref[...] = (
        jnp.dot(x_ref[...], w_ref[...], preferred_element_type=jnp.float32)
        + b_ref[...]
    ).astype(o_ref.dtype)


def fused_projection_pallas(x, w, b, tm_cap=512, vmem_budget=32 * 1024 * 1024):
    """x: (M, D), w: (D, N), b: (1, N) -> (M, N) = x @ w + b.
    N must be a multiple of 128 (caller pads) for lane-dense output stores."""
    M, D = x.shape
    N = w.shape[1]
    # Row tile from an explicit VMEM budget: double-buffered x/out tiles plus
    # the resident weight slab must fit the scoped VMEM limit (32 MiB is safe
    # on v5e/v6e/v7x).  No forced grid>=2 split: on single-TC v5e/v6e extra
    # grid steps are pure per-step overhead; at large M the 512 cap already
    # yields >=4 steps so v7x megacore sharding still overlaps DMA/compute.
    resident = (D * N + N) * 4
    per_row = 2 * (D + N) * 4
    tm_budget = max(8, ((vmem_budget - resident) // per_row) // 8 * 8)
    tm = max(8, min(tm_cap, tm_budget, ((M + 7) // 8) * 8))
    grid = pl.cdiv(M, tm)
    m_pad = grid * tm
    if m_pad != M:  # pad only the ragged tail; no copy at all when aligned
        x = jnp.pad(x, ((0, m_pad - M), (0, 0)))
    out = pl.pallas_call(
        _fused_proj_kernel,
        out_shape=jax.ShapeDtypeStruct((m_pad, N), jnp.float32),
        grid=(grid,),
        in_specs=[
            pl.BlockSpec((tm, D), lambda i: (i, 0)),
            pl.BlockSpec((D, N), lambda i: (0, 0)),
            pl.BlockSpec((1, N), lambda i: (0, 0)),
        ],
        out_specs=pl.BlockSpec((tm, N), lambda i: (i, 0)),
        compiler_params=pltpu.CompilerParams(
            dimension_semantics=("parallel",),
            vmem_limit_bytes=int(vmem_budget),
        ),
    )(x, w, b)
    return out[:M] if m_pad != M else out


# ----------------- kernel 2: per-sequence attention pooling ------------------
def _pool_kernel(x1_ref, q_ref, x2t_ref, mask_ref, w0_ref, o_ref):
    # One grid step = one sequence j: produce all label_len slots at once.
    x1 = x1_ref[...]                                   # (T, H) history of seq j
    q = q_ref[...]                                     # (L, H) = x2[t_k,j]+wms[t_k,j]
    sig = jax.nn.sigmoid(q[:, None, :] + x1[None, :, :])          # (L, T, H)
    score = jnp.sum(sig * w0_ref[...][None, :, :], axis=-1)       # (L, T)
    # mask folds both (s <= t_k) causality and slot validity (k < n_slots_j).
    score = score * mask_ref[...]                                  # (L, T)
    pooled = jnp.sum(score[:, :, None] * x1[None, :, :], axis=1)   # (L, H)
    o_ref[...] = pooled + x2t_ref[...]


def attention_pool_pallas(x1_bt, q, x2t, mask, w0_row):
    """x1_bt: (B,T,H); q, x2t: (B,L,H); mask: (B,L,T); w0_row: (1,H) -> (B,L,H)."""
    B, T, H = x1_bt.shape
    L = q.shape[1]
    # Grid over sequences; each writes a disjoint output block -> "parallel"
    # (lets v7x shard across its 2 TensorCores; harmless on v5e/v6e).
    # With one x1 gather per sequence the default 2-deep pipeline is enough,
    # so no pipeline_mode=pl.Buffered(3) is needed here.
    return pl.pallas_call(
        _pool_kernel,
        out_shape=jax.ShapeDtypeStruct((B, L, H), jnp.float32),
        grid=(B,),
        in_specs=[
            pl.BlockSpec((None, T, H), lambda g: (g, 0, 0)),
            pl.BlockSpec((None, L, H), lambda g: (g, 0, 0)),
            pl.BlockSpec((None, L, H), lambda g: (g, 0, 0)),
            pl.BlockSpec((None, L, T), lambda g: (g, 0, 0)),
            pl.BlockSpec((1, H), lambda g: (0, 0)),
        ],
        out_specs=pl.BlockSpec((None, L, H), lambda g: (g, 0, 0)),
        compiler_params=pltpu.CompilerParams(dimension_semantics=("parallel",)),
    )(x1_bt, q, x2t, mask, w0_row)


# ------------------------- host-side glue (bookkeeping) ----------------------
def build_label_groups(batch_sizes, label_len):
    """Per-sequence label bookkeeping (batch_sizes is host data in PyTorch too).

    For sequence j of length L_j, the label slots are k = 0..min(label_len,L_j)-1
    at timesteps t = (L_j - n_j) + k, written to h[j, k].  Returns
      t_grp      (B, label_len) int32  : timestep per slot (0-padded),
      slot_valid (B, label_len) float32: 1 where the slot exists,
      mask       (B, label_len, T) float32: slot_valid & (s <= t)."""
    bs = np.asarray(batch_sizes, dtype=np.int64)
    T = len(bs)
    B = int(bs[0])
    lengths = (np.arange(B)[None, :] < bs[:, None]).sum(axis=0)      # (B,)
    n_slots = np.minimum(label_len, lengths)                         # (B,)
    k = np.arange(label_len)[None, :]                                # (1, L)
    t_grp = (lengths - n_slots)[:, None] + k                         # (B, L)
    slot_valid = (k < n_slots[:, None])                              # (B, L)
    t_grp = np.where(slot_valid, t_grp, 0).astype(np.int32)
    s_ids = np.arange(T)[None, None, :]                              # (1, 1, T)
    mask = (slot_valid[:, :, None] & (s_ids <= t_grp[:, :, None])).astype(np.float32)
    return t_grp, slot_valid.astype(np.float32), mask


def prepare_stamp_params(W1, b1, W2, W3, w0):
    """Build (once, outside the per-call path) the fused, lane-padded weight
    slab and the w0 row.  Weights stored (in, out)."""
    D, H = W1.shape
    N = 3 * H
    N_pad = ((N + 127) // 128) * 128
    w_cat = jnp.concatenate([W1, W2, W3], axis=1)                    # (D, 3H)
    b_cat = jnp.concatenate([b1, jnp.zeros((1, 2 * H), b1.dtype)], axis=1)
    if N_pad != N:  # pad to 128 lanes -> unmasked output stores in kernel 1
        w_cat = jnp.pad(w_cat, ((0, 0), (0, N_pad - N)))
        b_cat = jnp.pad(b_cat, ((0, 0), (0, N_pad - N)))
    return {"w_cat": w_cat, "b_cat": b_cat, "w0_row": w0.reshape(1, H),
            "D": D, "H": H}


def stamp_forward_pallas(padded, batch_sizes, params, label_len=4):
    """padded: (T, B, D) zero-padded packed sequence (time-major, like
    pad_packed_sequence, pad rows exactly zero).  Returns h: (B, label_len, H).

    NOTE: x1 at padded (t >= length_j) rows equals b1 (bias leak) since pad
    rows are not re-masked; this never reaches the output because the pooling
    mask only admits s <= t < length_j (packed-sequence invariant)."""
    T, B, D = padded.shape
    H = params["H"]

    # Batch-major everywhere: one input transpose up front, nothing between
    # the two pallas_calls needs re-laying out.
    x_rows = jnp.transpose(padded, (1, 0, 2)).reshape(B * T, D)
    y = fused_projection_pallas(x_rows, params["w_cat"], params["b_cat"])
    y = y.reshape(B, T, -1)                                          # (B, T, Npad)
    x1_bt = y[..., :H]                                               # (B, T, H)
    x2_bt = y[..., H:2 * H]                                          # (B, T, H)
    x3_bt = y[..., 2 * H:3 * H]                                      # (B, T, H)

    # wms = w3(cumsum(x)/k) == cumsum(w3(x))/k  (w3 has no bias).
    # TODO(synk): cumsum + the tiny (t,j) gathers below stay as XLA glue; a
    # single fused pallas_call gridded over sequences could absorb them.
    denom = jnp.arange(1, T + 1, dtype=y.dtype).reshape(1, T, 1)
    wms_bt = jnp.cumsum(x3_bt, axis=1) / denom

    # Per-sequence label slots (host bookkeeping, as in the PyTorch loop).
    t_grp, slot_valid, mask = build_label_groups(batch_sizes, label_len)
    b_idx = np.arange(B)[:, None]
    valid3 = jnp.asarray(slot_valid)[:, :, None]                     # (B, L, 1)
    x2t = x2_bt[b_idx, t_grp] * valid3                               # (B, L, H)
    q = (x2_bt[b_idx, t_grp] + wms_bt[b_idx, t_grp]) * valid3        # (B, L, H)

    # Pooling kernel output is already h[j, k]: no scatter needed.
    return attention_pool_pallas(x1_bt, q, x2t, jnp.asarray(mask),
                                 params["w0_row"])


# ------------------------------ pure-JAX reference ---------------------------
def stamp_ref(padded, batch_sizes, W1, b1, W2, W3, w0, label_len=4):
    """Faithful mirror of the PyTorch STAMP.forward."""
    T, B, D = padded.shape
    H = W1.shape[1]
    bs = np.asarray(batch_sizes, dtype=np.int64)
    valid = jnp.asarray(
        (np.arange(B)[None, :] < bs[:, None]).astype(np.float32))[:, :, None]
    x1 = (padded @ W1 + b1) * valid      # pad_packed_sequence zeroes pad rows
    x2 = (padded @ W2) * valid
    m_s = jnp.cumsum(padded, axis=0) / jnp.arange(
        1, T + 1, dtype=padded.dtype).reshape(T, 1, 1)
    wms = m_s @ W3
    label_where = bs - np.concatenate(
        [bs[label_len:], np.zeros(label_len, dtype=bs.dtype)])
    already = np.zeros(int(bs[0]), dtype=np.int64)
    h = jnp.zeros((int(bs[0]), label_len, H), dtype=jnp.float32)
    for t in range(T):
        lw = int(label_where[t])
        if lw == 0:
            continue
        lo, hi = int(bs[t]) - lw, int(bs[t])
        score = jax.nn.sigmoid(
            x1[:t + 1, lo:hi] + x2[t:t + 1, lo:hi] + wms[t:t + 1, lo:hi]) @ w0
        pooled = jnp.sum(score * x1[:t + 1, lo:hi], axis=0) + x2[t, lo:hi]
        l1 = np.arange(lo, hi)
        l2 = already[lo:hi].copy()
        already[lo:hi] += 1
        h = h.at[l1, l2].set(pooled)
    return h


if __name__ == "__main__":
    key = jax.random.PRNGKey(0)

    input_size = 32    # D
    hidden_size = 32   # H
    label_len = 4      # STAMP.forward default

    # Packed-sequence surrogate: sorted-descending lengths -> batch_sizes.
    lengths = [8, 7, 5, 5, 3, 2]
    T = lengths[0]
    B = len(lengths)
    batch_sizes = np.array(
        [sum(1 for L in lengths if L > t) for t in range(T)], dtype=np.int64)

    key, k_in = jax.random.split(key)
    padded = jax.random.normal(k_in, (T, B, input_size), dtype=jnp.float32)
    valid = (np.arange(B)[None, :] < batch_sizes[:, None]).astype(np.float32)
    padded = padded * jnp.asarray(valid)[:, :, None]   # zero pad rows

    # PyTorch-style uniform(+-1/sqrt(fan_in)) init; weights stored as (in, out).
    def uniform_init(k, shape, fan_in):
        bound = 1.0 / np.sqrt(fan_in)
        return jax.random.uniform(k, shape, minval=-bound, maxval=bound,
                                  dtype=jnp.float32)

    key, k1, kb1, k2, k3, k0 = jax.random.split(key, 6)
    W1 = uniform_init(k1, (input_size, hidden_size), input_size)
    b1 = uniform_init(kb1, (1, hidden_size), input_size)
    W2 = uniform_init(k2, (input_size, hidden_size), input_size)
    W3 = uniform_init(k3, (input_size, hidden_size), input_size)
    w0 = uniform_init(k0, (hidden_size, 1), hidden_size)

    params = prepare_stamp_params(W1, b1, W2, W3, w0)   # hoisted out of the call
    h = stamp_forward_pallas(padded, batch_sizes, params, label_len=label_len)
    jax.block_until_ready(h)

    h_ref = stamp_ref(padded, batch_sizes, W1, b1, W2, W3, w0,
                      label_len=label_len)
    np.testing.assert_allclose(np.asarray(h), np.asarray(h_ref),
                               rtol=5e-5, atol=5e-5)

    print("KERNEL_OK")
</pallas_src>

<mosaic_0001>
module attributes {stable_mosaic.version = 11 : i64} {
  func.func @_fused_proj_kernel(%arg0: i32, %arg1: memref<48x32xf32, #tpu.memory_space<vmem>>, %arg2: memref<32x128xf32, #tpu.memory_space<vmem>>, %arg3: memref<1x128xf32, #tpu.memory_space<vmem>>, %arg4: memref<48x128xf32, #tpu.memory_space<vmem>>) attributes {dimension_semantics = [#tpu.dimension_semantics<parallel>], iteration_bounds = array<i64: 1>, scalar_prefetch = 0 : i64, scratch_operands = 0 : i64, tpu.core_type = #tpu.core_type<tc>, window_params = [{transform_indices = @transform_0, window_bounds = array<i64: 48, 32>}, {pipeline_mode = #tpu.pipeline_mode<synchronous>, transform_indices = @transform_1, window_bounds = array<i64: 32, 128>}, {pipeline_mode = #tpu.pipeline_mode<synchronous>, transform_indices = @transform_2, window_bounds = array<i64: 1, 128>}, {transform_indices = @transform_3, window_bounds = array<i64: 48, 128>}]} {
    %c0 = arith.constant 0 : index
    %c0_0 = arith.constant 0 : index
    %0 = vector.load %arg1[%c0, %c0_0] : memref<48x32xf32, #tpu.memory_space<vmem>>, vector<48x32xf32>
    %c0_1 = arith.constant 0 : index
    %c0_2 = arith.constant 0 : index
    %1 = vector.load %arg2[%c0_1, %c0_2] : memref<32x128xf32, #tpu.memory_space<vmem>>, vector<32x128xf32>
    %cst = arith.constant dense<0.000000e+00> : vector<48x128xf32>
    %2 = tpu.matmul %0, %1, %cst {dimension_numbers = #tpu.dot_dimension_numbers<[1], [0], [0], [1], [0, 0, 1, 1], [], []>} : vector<48x32xf32>, vector<32x128xf32>, vector<48x128xf32> -> vector<48x128xf32>
    %c0_3 = arith.constant 0 : index
    %c0_4 = arith.constant 0 : index
    %3 = vector.load %arg3[%c0_3, %c0_4] : memref<1x128xf32, #tpu.memory_space<vmem>>, vector<1x128xf32>
    %4 = vector.broadcast %3 : vector<1x128xf32> to vector<48x128xf32>
    %5 = arith.addf %2, %4 : vector<48x128xf32>
    %c0_5 = arith.constant 0 : index
    %c0_6 = arith.constant 0 : index
    %6 = vector.load %arg4[%c0_5, %c0_6] : memref<48x128xf32, #tpu.memory_space<vmem>>, vector<48x128xf32>
    tpu.vector_store %arg4[%c0_5, %c0_6], %5 {strides = array<i32>} : memref<48x128xf32, #tpu.memory_space<vmem>>, vector<48x128xf32>,
    return
  }
  func.func @transform_0(%arg0: i32) -> (i32, i32) {
    %c0_i32 = arith.constant 0 : i32
    %c0_i32_0 = arith.constant 0 : i32
    return %arg0, %c0_i32 : i32, i32
  }
  func.func @transform_1(%arg0: i32) -> (i32, i32) {
    %c0_i32 = arith.constant 0 : i32
    %c0_i32_0 = arith.constant 0 : i32
    %c0_i32_1 = arith.constant 0 : i32
    return %c0_i32, %c0_i32_0 : i32, i32
  }
  func.func @transform_2(%arg0: i32) -> (i32, i32) {
    %c0_i32 = arith.constant 0 : i32
    %c0_i32_0 = arith.constant 0 : i32
    %c0_i32_1 = arith.constant 0 : i32
    return %c0_i32, %c0_i32_0 : i32, i32
  }
  func.func @transform_3(%arg0: i32) -> (i32, i32) {
    %c0_i32 = arith.constant 0 : i32
    %c0_i32_0 = arith.constant 0 : i32
    return %arg0, %c0_i32 : i32, i32
  }
}

</mosaic_0001>

<llo_original>
// kernel: tpu_custom_call.1
$region0: #{tpu_custom_call.1}
  #allocation0 [shape = 'u32[]', space=smem, size = 0x4, offset = 0x4, fixed_abs, tag = 'smem constant byte address 0x4 - core index']
  #allocation1 [shape = 'u32[144,128]{1,0:T(1,128)}', space=vmem, size = 0x12000, scoped, tag = 'internal scratch']
  %s0 = inlined_call_operand.vmem [shape: f32[48,32], index: 0, kind: input, shape index: {}]
  %s1 = inlined_call_operand.vmem [shape: f32[32,128], index: 1, kind: input, shape index: {}]
  %s2 = inlined_call_operand.vmem [shape: f32[1,128], index: 2, kind: input, shape index: {}]
  %s3 = inlined_call_operand.hbm [shape: f32[48,128], index: 3, kind: output, shape index: {}]
  %s4 = sld [smem:[#allocation0]]
  $region22: #{tpu_custom_call.1} parent=0
    _
  %s6 = ssub.s32 1, %s4
  %s7 = scalar_select 0, %s6, %s4
  $region1: #{tpu_custom_call.1} parent=0
    #allocation2 [shape = 'u8[24576]{0}', space=vmem, size = 0x6000, scoped, tag = 'output window, operand 0, single buffered']
    #allocation3 [shape = 's32[1]{0}', space=sflag, size = 0x4, scoped, tag = 'scoped memory for tpu_custom_call.1']
    %8 = vsyncpa [#allocation3], 0
    // Predicated region
    $region2: #{tpu_custom_call.1} parent=1 // pred_check
      _
    $region3: #{tpu_custom_call.1} parent=1 // pred_check_branch
      %10 = sbr.rel (0) target = $region5
    $region4: #{tpu_custom_call.1} parent=1 // pred_region
      _
    $region5: #{tpu_custom_call.1} parent=1 // pred_fallthru
      _
    // Predicated region
    $region6: #{tpu_custom_call.1} parent=1 // pred_check
      _
    $region7: #{tpu_custom_call.1} parent=1 // pred_check_branch
      %12 = sbr.rel (0) target = $region9
    $region8: #{tpu_custom_call.1} parent=1 // pred_region
      _
    $region9: #{tpu_custom_call.1} parent=1 // pred_fallthru
      _
    // Predicated region
    $region10: #{tpu_custom_call.1} parent=1 // pred_check
      _
    $region11: #{tpu_custom_call.1} parent=1 // pred_check_branch
      %14 = sbr.rel (0) target = $region13
    $region12: #{tpu_custom_call.1} parent=1 // pred_region
      _
    $region13: #{tpu_custom_call.1} parent=1 // pred_fallthru
      _
    %v15 = vld [vmem:[%s0] sm:$0xff]
    %v16 = vld [vmem:[%s0 + $0x8] sm:$0xff]
    %v17 = vld [vmem:[%s0 + $0x10] sm:$0xff]
    %v18 = vld [vmem:[%s0 + $0x18] sm:$0xff]
    %v19 = vld [vmem:[%s0 + $0x20] sm:$0xff]
    %v20 = vld [vmem:[%s0 + $0x28] sm:$0xff]
    %v21 = vld [vmem:[%s1] sm:$0xff]
    %v22 = vld [vmem:[%s1 + $0x8] sm:$0xff]
    %v23 = vld [vmem:[%s1 + $0x10] sm:$0xff]
    %v24 = vld [vmem:[%s1 + $0x18] sm:$0xff]
    %v25 = vld [vmem:[%s2] sm:$0x1]
    %v27 = vlaneseq
    %v28 = vshrl.u32 %v27, 7
    %v29 = vsub.s32 0, %v28
    %v30 = vrot.slane %v25, %v29
    %vm32 = vcmask 261120
    %v34 = vsel %vm32, %v15, 0
    %v37 = vsel %vm32, %v16, 0
    %v40 = vsel %vm32, %v17, 0
    %v43 = vsel %vm32, %v18, 0
    %v46 = vsel %vm32, %v19, 0
    %v49 = vsel %vm32, %v20, 0
    %51 = vmatprep.subr.mxu0 0.0
    %52 = vmatpush1.msra.mxu0 0.0
    %53 = vmatprep.subr.mxu0 0.0
    %54 = vmatpush1.msra.mxu0 0.0
    %55 = vmatprep.subr.mxu0 0.0
    %56 = vmatpush1.msra.mxu0 0.0
    %57 = vmatprep.subr.mxu0 0.0
    %58 = vmatpush1.msra.mxu0 0.0
    %59 = vmatprep.subr.mxu0 0.0
    %60 = vmatpush1.msra.mxu0 0.0
    %61 = vmatprep.subr.mxu0 0.0
    %62 = vmatpush1.msra.mxu0 0.0
    %63 = vmatprep.subr.mxu0 0.0
    %64 = vmatpush1.msra.mxu0 0.0
    %65 = vmatprep.subr.mxu0 0.0
    %66 = vmatpush1.msra.mxu0 0.0
    %67 = vmatprep.subr.mxu0 0.0
    %68 = vmatpush1.msra.mxu0 0.0
    %69 = vmatprep.subr.mxu0 0.0
    %70 = vmatpush1.msra.mxu0 0.0
    %71 = vmatprep.subr.mxu0 0.0
    %72 = vmatpush1.msra.mxu0 0.0
    %73 = vmatprep.subr.mxu0 0.0
    %74 = vmatpush1.msra.mxu0 0.0
    %75 = vmatprep.subr.mxu0 0.0
    %76 = vmatpush1.msra.mxu0 %v24
    %77 = vmatprep.subr.mxu0 0.0
    %78 = vmatpush1.msra.mxu0 %v23
    %79 = vmatprep.subr.mxu0 0.0
    %80 = vmatpush1.msra.mxu0 %v22
    %81 = vmatprep.subr.mxu0 0.0
    %82 = vmatpush1.msra.mxu0 %v21
    %83 = vmatprep.subr.mxu0 0.0
    %84 = vmatpush2.msra.mxu0 0.0
    %85 = vmatprep.subr.mxu0 0.0
    %86 = vmatpush2.msra.mxu0 0.0
    %87 = vmatprep.subr.mxu0 0.0
    %88 = vmatpush2.msra.mxu0 0.0
    %89 = vmatprep.subr.mxu0 0.0
    %90 = vmatpush2.msra.mxu0 0.0
    %91 = vmatprep.subr.mxu0 0.0
    %92 = vmatpush2.msra.mxu0 0.0
    %93 = vmatprep.subr.mxu0 0.0
    %94 = vmatpush2.msra.mxu0 0.0
    %95 = vmatprep.subr.mxu0 0.0
    %96 = vmatpush2.msra.mxu0 0.0
    %97 = vmatprep.subr.mxu0 0.0
    %98 = vmatpush2.msra.mxu0 0.0
    %99 = vmatprep.subr.mxu0 0.0
    %100 = vmatpush2.msra.mxu0 0.0
    %101 = vmatprep.subr.mxu0 0.0
    %102 = vmatpush2.msra.mxu0 0.0
    %103 = vmatprep.subr.mxu0 0.0
    %104 = vmatpush2.msra.mxu0 0.0
    %105 = vmatprep.subr.mxu0 0.0
    %106 = vmatpush2.msra.mxu0 0.0
    %107 = vmatprep.subr.mxu0 0.0
    %108 = vmatpush2.msra.mxu0 0.0
    %109 = vmatprep.subr.mxu0 0.0
    %110 = vmatpush2.msra.mxu0 0.0
    %111 = vmatprep.subr.mxu0 0.0
    %112 = vmatpush2.msra.mxu0 0.0
    %113 = vmatprep.subr.mxu0 0.0
    %114 = vmatpush2.msra.mxu0 0.0
    %115 = vmatprep.mubr.f32.mxu0 0.0
    %116 = vmatmul.mubr.f32.gmra.mxu0 %v34
    %v117 = vpop.f32.mrf.mxu0
    %v118 = vadd.f32 %v30, %v117
    %v119 = vpop.f32.mrf.mxu0
    %120 = vmatprep.mubr.f32.mxu0 0.0
    %121 = vmatmul.mubr.f32.gmra.mxu0 %v37
    %v122 = vpop.f32.mrf.mxu0
    %v123 = vadd.f32 %v30, %v122
    %v124 = vpop.f32.mrf.mxu0
    %125 = vmatprep.mubr.f32.mxu0 0.0
    %126 = vmatmul.mubr.f32.gmra.mxu0 %v40
    %v127 = vpop.f32.mrf.mxu0
    %v128 = vadd.f32 %v30, %v127
    %v129 = vpop.f32.mrf.mxu0
    %130 = vmatprep.mubr.f32.mxu0 0.0
    %131 = vmatmul.mubr.f32.gmra.mxu0 %v43
    %v132 = vpop.f32.mrf.mxu0
    %v133 = vadd.f32 %v30, %v132
    %v134 = vpop.f32.mrf.mxu0
    %135 = vmatprep.mubr.f32.mxu0 0.0
    %136 = vmatmul.mubr.f32.gmra.mxu0 %v46
    %v137 = vpop.f32.mrf.mxu0
    %v138 = vadd.f32 %v30, %v137
    %v139 = vpop.f32.mrf.mxu0
    %140 = vmatprep.mubr.f32.mxu0 0.0
    %141 = vmatmul.mubr.f32.gmra.mxu0 %v49
    %v142 = vpop.f32.mrf.mxu0
    %v143 = vadd.f32 %v30, %v142
    %v144 = vpop.f32.mrf.mxu0
    %145 = vdwg.mxu0
    %146 = vst [vmem:[#allocation2] sm:$0xff] %v118
    %147 = vst [vmem:[#allocation2 + $0x8] sm:$0xff] %v123
    %148 = vst [vmem:[#allocation2 + $0x10] sm:$0xff] %v128
    %149 = vst [vmem:[#allocation2 + $0x18] sm:$0xff] %v133
    %150 = vst [vmem:[#allocation2 + $0x20] sm:$0xff] %v138
    %151 = vst [vmem:[#allocation2 + $0x28] sm:$0xff] %v143
    // Predicated region
    $region14: #{tpu_custom_call.1} parent=1 // pred_check
      _
    $region15: #{tpu_custom_call.1} parent=1 // pred_check_branch
      %153 = sbr.rel (0) target = $region17
    $region16: #{tpu_custom_call.1} parent=1 // pred_region
      %s155 = ssub.s32 768, 768
      %156 = vsyncadd [#allocation3], %s155
      %s157 = sshll.u32 [#allocation2], 4
      %s158 = int_to_ptr.vmem [resolvable:$true] %s157
      %163 = dma.vmem_to_hbm [thread:$0]  %s158, 768, %s3, [#allocation3], 128, 128, 8
    $region17: #{tpu_custom_call.1} parent=1 // pred_fallthru
      _
    // Predicated region
    $region18: #{tpu_custom_call.1} parent=1 // pred_check
      _
    $region19: #{tpu_custom_call.1} parent=1 // pred_check_branch
      %165 = sbr.rel (0) target = $region21
    $region20: #{tpu_custom_call.1} parent=1 // pred_region
      %166 = dma.done [#allocation3], 768
    $region21: #{tpu_custom_call.1} parent=1 // pred_fallthru
      _
    %167 = vsyncpa [#allocation3], 1

</llo_original>
